<compile_context>
chip_gen: v7x
topology: tpu7x:2x2x1
jax: 0.10.0
libtpu: 0.0.40
codegen_flags: <defaults>
</compile_context>

<pallas_src>
import functools

import numpy as np
import jax
import jax.numpy as jnp
from jax.experimental import pallas as pl
from jax.experimental.pallas import tpu as pltpu


def _center_loss_kernel(f1_ref, f2_ref, o_ref, *, groups, chunk, feat_dim):
    """One grid step covers `groups` label groups of `chunk` rows each.

    f1_ref/f2_ref: (groups*chunk, feat_dim) VMEM tiles.
    o_ref:         (1, 8, feat_dim) lane-dense per-lane partial sums for this
                   step.  The scalar reduction is deferred to the wrapper so
                   the inner loop has no cross-lane reduce and no masked
                   single-lane stores, and the grid axis stays 'parallel'.
    """

    def partial_sums(ref):
        x = ref[...].astype(jnp.float32)                 # (G*C, D)
        xg = x.reshape(groups, chunk, feat_dim)          # tile-aligned split (C % 8 == 0)
        ctr = jnp.mean(xg, axis=1, keepdims=True)        # per-group center (G, 1, D)
        sq = (xg - ctr) ** 2                             # (G, C, D) squared deviations
        # Fold rows into 8-sublane slabs and add them elementwise: pure VPU
        # adds over the leading axis; only the group mean above touches XLU.
        return sq.reshape(groups * chunk // 8, 8, feat_dim).sum(axis=0)   # (8, D)

    o_ref[0] = partial_sums(f1_ref) + partial_sums(f2_ref)


def center_loss(feat1, feat2, label1, label2, margin=0.1, dist_type='l2',
                *, target_block_bytes=2 * 1024 * 1024):
    """Pallas implementation of center_loss.forward.

    feat1, feat2: (N, D) arrays.  label1 is used only to derive the number of
    unique labels and must be concrete (host-side), matching the PyTorch
    chunk() logic — this wrapper cannot be called with a traced label1.
    margin / dist_type do not influence the returned value in the reference
    forward, so they are ignored.
    """
    del label2, margin, dist_type  # unused by the PyTorch forward's return value

    N, D = feat1.shape
    assert feat2.shape == (N, D), "feat1/feat2 must have identical shapes"
    label_num = int(len(np.unique(np.asarray(label1))))
    assert N % label_num == 0, "chunking assumes equal-sized label groups"
    C = N // label_num  # chunk (group) size
    # (8,128) tiling rule + tile-aligned in-kernel reshape: require C % 8 == 0.
    # TODO(synk): pad/mask the last chunk to support group sizes not divisible by 8.
    assert C % 8 == 0, f"group size {C} must be a multiple of 8 sublanes"

    # Pick G = groups per grid step so each input block is ~target_block_bytes
    # (big blocks -> fewer, larger DMAs; this kernel is pure HBM-BW bound).
    itemsize = jnp.dtype(feat1.dtype).itemsize
    target_rows = max(C, target_block_bytes // max(1, D * itemsize))
    target_g = max(1, min(label_num, target_rows // C))
    G = max(g for g in range(1, int(target_g) + 1) if label_num % g == 0)
    num_blocks = label_num // G
    block_rows = G * C

    kernel = functools.partial(_center_loss_kernel,
                               groups=G, chunk=C, feat_dim=D)

    partials = pl.pallas_call(
        kernel,
        out_shape=jax.ShapeDtypeStruct((num_blocks, 8, D), jnp.float32),
        grid_spec=pltpu.PrefetchScalarGridSpec(
            num_scalar_prefetch=0,
            grid=(num_blocks,),
            in_specs=[
                pl.BlockSpec((block_rows, D), lambda g: (g, 0)),
                pl.BlockSpec((block_rows, D), lambda g: (g, 0)),
            ],
            # Lane-dense, fully tile-aligned per-step output block.
            out_specs=pl.BlockSpec((1, 8, D), lambda g: (g, 0, 0)),
        ),
        compiler_params=pltpu.CompilerParams(
            # Each step writes its own output block -> independent -> parallel
            # (lets v7x shard the grid over both TensorCores).
            dimension_semantics=("parallel",),
            # ~2 MiB/input blocks: 2 inputs x 2 buffers ~ 8 MiB resident plus
            # f32 temporaries; 32 MiB is within physical VMEM on v5e/v6e/v7x.
            vmem_limit_bytes=32 * 1024 * 1024,
        ),
    )(feat1, feat2)

    # Tiny epilogue reduction over (num_blocks, 8, D) partials.
    return jnp.sum(partials)


def _center_loss_ref(feat1, feat2, label_num):
    # Pure-JAX reference for verification (mirrors the PyTorch loop).
    C = feat1.shape[0] // label_num
    dist = jnp.float32(0.0)
    for i in range(label_num):
        f1 = feat1[i * C:(i + 1) * C].astype(jnp.float32)
        f2 = feat2[i * C:(i + 1) * C].astype(jnp.float32)
        dist += jnp.sum((f1 - jnp.mean(f1, axis=0, keepdims=True)) ** 2)
        dist += jnp.sum((f2 - jnp.mean(f2, axis=0, keepdims=True)) ** 2)
    return dist


if __name__ == "__main__":
    key = jax.random.PRNGKey(0)
    k1, k2 = jax.random.split(key)

    N, D = 64, 256          # batch, feature dim
    label_num = 4           # four identity groups -> chunk size 16
    C = N // label_num
    feat1 = jax.random.normal(k1, (N, D), dtype=jnp.float32)
    feat2 = jax.random.normal(k2, (N, D), dtype=jnp.float32)
    label1 = jnp.repeat(jnp.arange(label_num, dtype=jnp.int32), C)
    label2 = label1

    ref = _center_loss_ref(feat1, feat2, label_num)

    # Default block sizing: all groups fit in one ~2 MiB-target block (grid=1).
    loss = jax.block_until_ready(center_loss(feat1, feat2, label1, label2))
    np.testing.assert_allclose(np.asarray(loss), np.asarray(ref),
                               rtol=1e-4, atol=1e-3)

    # Force a small block target so the grid has multiple (parallel) steps.
    loss_multi = jax.block_until_ready(
        center_loss(feat1, feat2, label1, label2,
                    target_block_bytes=32 * 1024))
    np.testing.assert_allclose(np.asarray(loss_multi), np.asarray(ref),
                               rtol=1e-4, atol=1e-3)

    print("KERNEL_OK")
</pallas_src>

<mosaic_0001>
module attributes {stable_mosaic.version = 11 : i64} {
  func.func @_center_loss_kernel(%arg0: i32, %arg1: memref<64x256xf32, #tpu.memory_space<vmem>>, %arg2: memref<64x256xf32, #tpu.memory_space<vmem>>, %arg3: memref<1x8x256xf32, #tpu.memory_space<vmem>>) attributes {dimension_semantics = [#tpu.dimension_semantics<parallel>], iteration_bounds = array<i64: 1>, scalar_prefetch = 0 : i64, scratch_operands = 0 : i64, tpu.core_type = #tpu.core_type<tc>, window_params = [{transform_indices = @transform_0, window_bounds = array<i64: 64, 256>}, {transform_indices = @transform_1, window_bounds = array<i64: 64, 256>}, {transform_indices = @transform_2, window_bounds = array<i64: 1, 8, 256>}]} {
    %c0 = arith.constant 0 : index
    %c0_0 = arith.constant 0 : index
    %0 = vector.load %arg1[%c0, %c0_0] : memref<64x256xf32, #tpu.memory_space<vmem>>, vector<64x256xf32>
    %1 = vector.shape_cast %0 : vector<64x256xf32> to vector<4x16x256xf32>
    %cst = arith.constant dense<0.000000e+00> : vector<4x256xf32>
    %2 = vector.multi_reduction <add>, %1, %cst [1] : vector<4x16x256xf32> to vector<4x256xf32>
    %3 = vector.shape_cast %2 : vector<4x256xf32> to vector<4x1x256xf32>
    %cst_1 = arith.constant 1.600000e+01 : f32
    %4 = vector.broadcast %cst_1 : f32 to vector<4x1x256xf32>
    %5 = arith.divf %3, %4 : vector<4x1x256xf32>
    %6 = vector.broadcast %5 : vector<4x1x256xf32> to vector<4x16x256xf32>
    %7 = arith.subf %1, %6 : vector<4x16x256xf32>
    %8 = arith.mulf %7, %7 : vector<4x16x256xf32>
    %9 = vector.shape_cast %8 : vector<4x16x256xf32> to vector<8x8x256xf32>
    %cst_2 = arith.constant dense<0.000000e+00> : vector<8x256xf32>
    %10 = vector.multi_reduction <add>, %9, %cst_2 [0] : vector<8x8x256xf32> to vector<8x256xf32>
    %c0_3 = arith.constant 0 : index
    %c0_4 = arith.constant 0 : index
    %11 = vector.load %arg2[%c0_3, %c0_4] : memref<64x256xf32, #tpu.memory_space<vmem>>, vector<64x256xf32>
    %12 = vector.shape_cast %11 : vector<64x256xf32> to vector<4x16x256xf32>
    %cst_5 = arith.constant dense<0.000000e+00> : vector<4x256xf32>
    %13 = vector.multi_reduction <add>, %12, %cst_5 [1] : vector<4x16x256xf32> to vector<4x256xf32>
    %14 = vector.shape_cast %13 : vector<4x256xf32> to vector<4x1x256xf32>
    %cst_6 = arith.constant 1.600000e+01 : f32
    %15 = vector.broadcast %cst_6 : f32 to vector<4x1x256xf32>
    %16 = arith.divf %14, %15 : vector<4x1x256xf32>
    %17 = vector.broadcast %16 : vector<4x1x256xf32> to vector<4x16x256xf32>
    %18 = arith.subf %12, %17 : vector<4x16x256xf32>
    %19 = arith.mulf %18, %18 : vector<4x16x256xf32>
    %20 = vector.shape_cast %19 : vector<4x16x256xf32> to vector<8x8x256xf32>
    %cst_7 = arith.constant dense<0.000000e+00> : vector<8x256xf32>
    %21 = vector.multi_reduction <add>, %20, %cst_7 [0] : vector<8x8x256xf32> to vector<8x256xf32>
    %22 = arith.addf %10, %21 : vector<8x256xf32>
    %c0_8 = arith.constant 0 : index
    %c0_9 = arith.constant 0 : index
    %c0_10 = arith.constant 0 : index
    %23 = vector.load %arg3[%c0_8, %c0_9, %c0_10] : memref<1x8x256xf32, #tpu.memory_space<vmem>>, vector<1x8x256xf32>
    %24 = vector.shape_cast %23 : vector<1x8x256xf32> to vector<8x256xf32>
    %25 = vector.shape_cast %22 : vector<8x256xf32> to vector<1x8x256xf32>
    tpu.vector_store %arg3[%c0_8, %c0_9, %c0_10], %25 {strides = array<i32>} : memref<1x8x256xf32, #tpu.memory_space<vmem>>, vector<1x8x256xf32>,
    return
  }
  func.func @transform_0(%arg0: i32) -> (i32, i32) {
    %c0_i32 = arith.constant 0 : i32
    %c0_i32_0 = arith.constant 0 : i32
    return %arg0, %c0_i32 : i32, i32
  }
  func.func @transform_1(%arg0: i32) -> (i32, i32) {
    %c0_i32 = arith.constant 0 : i32
    %c0_i32_0 = arith.constant 0 : i32
    return %arg0, %c0_i32 : i32, i32
  }
  func.func @transform_2(%arg0: i32) -> (i32, i32, i32) {
    %c0_i32 = arith.constant 0 : i32
    %c0_i32_0 = arith.constant 0 : i32
    %c0_i32_1 = arith.constant 0 : i32
    return %arg0, %c0_i32, %c0_i32_0 : i32, i32, i32
  }
}

</mosaic_0001>

<llo_original>
// kernel: tpu_custom_call.1
$region0: #{tpu_custom_call.1}
  #allocation0 [shape = 'u32[]', space=smem, size = 0x4, offset = 0x4, fixed_abs, tag = 'smem constant byte address 0x4 - core index']
  #allocation1 [shape = 'u32[144,128]{1,0:T(1,128)}', space=vmem, size = 0x12000, scoped, tag = 'internal scratch']
  %s0 = inlined_call_operand.hbm [shape: f32[64,256], index: 0, kind: input, shape index: {}]
  %s1 = inlined_call_operand.hbm [shape: f32[64,256], index: 1, kind: input, shape index: {}]
  %s2 = inlined_call_operand.hbm [shape: f32[1,8,256], index: 2, kind: output, shape index: {}]
  %s3 = sld [smem:[#allocation0]]
  $region26: #{tpu_custom_call.1} parent=0
    _
  %s5 = ssub.s32 1, %s3
  %s6 = scalar_select 0, %s5, %s3
  $region1: #{tpu_custom_call.1} parent=0
    #allocation2 [shape = 'u8[65536]{0}', space=vmem, size = 0x10000, scoped, tag = 'input window, operand 0, single buffered']
    #allocation3 [shape = 's32[1]{0}', space=sflag, size = 0x4, scoped, tag = 'scoped memory for tpu_custom_call.1']
    #allocation4 [shape = 's32[1]{0}', space=sflag, size = 0x4, scoped, tag = 'scoped memory for tpu_custom_call.1']
    #allocation5 [shape = 'u8[65536]{0}', space=vmem, size = 0x10000, scoped, tag = 'input window, operand 1, single buffered']
    #allocation6 [shape = 's32[1]{0}', space=sflag, size = 0x4, scoped, tag = 'scoped memory for tpu_custom_call.1']
    #allocation7 [shape = 'u8[8192]{0}', space=vmem, size = 0x2000, scoped, tag = 'output window, operand 0, single buffered']
    %7 = vsyncpa [#allocation3], 0
    %8 = vsyncpa [#allocation6], 0
    %9 = vsyncpa [#allocation4], 0
    // Predicated region
    $region2: #{tpu_custom_call.1} parent=1 // pred_check
      _
    $region3: #{tpu_custom_call.1} parent=1 // pred_check_branch
      %11 = sbr.rel (0) target = $region5
    $region4: #{tpu_custom_call.1} parent=1 // pred_region
      %s13 = ssub.s32 2048, 2048
      %14 = vsyncadd [#allocation3], %s13
      %s15 = sshll.u32 [#allocation2], 4
      %s16 = int_to_ptr.vmem [resolvable:$true] %s15
      %21 = dma.hbm_to_vmem [thread:$0]  %s0, 2048, %s16, [#allocation3], 256, 256, 16
    $region5: #{tpu_custom_call.1} parent=1 // pred_fallthru
      _
    // Predicated region
    $region6: #{tpu_custom_call.1} parent=1 // pred_check
      _
    $region7: #{tpu_custom_call.1} parent=1 // pred_check_branch
      %23 = sbr.rel (0) target = $region9
    $region8: #{tpu_custom_call.1} parent=1 // pred_region
      %s25 = ssub.s32 2048, 2048
      %26 = vsyncadd [#allocation6], %s25
      %s27 = sshll.u32 [#allocation5], 4
      %s28 = int_to_ptr.vmem [resolvable:$true] %s27
      %33 = dma.hbm_to_vmem [thread:$0]  %s1, 2048, %s28, [#allocation6], 256, 256, 16
    $region9: #{tpu_custom_call.1} parent=1 // pred_fallthru
      _
    // Predicated region
    $region10: #{tpu_custom_call.1} parent=1 // pred_check
      _
    $region11: #{tpu_custom_call.1} parent=1 // pred_check_branch
      %35 = sbr.rel (0) target = $region13
    $region12: #{tpu_custom_call.1} parent=1 // pred_region
      %36 = dma.done [#allocation3], 2048
    $region13: #{tpu_custom_call.1} parent=1 // pred_fallthru
      _
    // Predicated region
    $region14: #{tpu_custom_call.1} parent=1 // pred_check
      _
    $region15: #{tpu_custom_call.1} parent=1 // pred_check_branch
      %38 = sbr.rel (0) target = $region17
    $region16: #{tpu_custom_call.1} parent=1 // pred_region
      %39 = dma.done [#allocation6], 2048
    $region17: #{tpu_custom_call.1} parent=1 // pred_fallthru
      _
    %v40 = vld [vmem:[#allocation2] sm:$0xff]
    %v41 = vld [vmem:[#allocation2 + $0x8] sm:$0xff]
    %v42 = vld [vmem:[#allocation2 + $0x10] sm:$0xff]
    %v43 = vld [vmem:[#allocation2 + $0x18] sm:$0xff]
    %v44 = vld [vmem:[#allocation2 + $0x20] sm:$0xff]
    %v45 = vld [vmem:[#allocation2 + $0x28] sm:$0xff]
    %v46 = vld [vmem:[#allocation2 + $0x30] sm:$0xff]
    %v47 = vld [vmem:[#allocation2 + $0x38] sm:$0xff]
    %v48 = vld [vmem:[#allocation2 + $0x40] sm:$0xff]
    %v49 = vld [vmem:[#allocation2 + $0x48] sm:$0xff]
    %v50 = vld [vmem:[#allocation2 + $0x50] sm:$0xff]
    %v51 = vld [vmem:[#allocation2 + $0x58] sm:$0xff]
    %v52 = vld [vmem:[#allocation2 + $0x60] sm:$0xff]
    %v53 = vld [vmem:[#allocation2 + $0x68] sm:$0xff]
    %v54 = vld [vmem:[#allocation2 + $0x70] sm:$0xff]
    %v55 = vld [vmem:[#allocation2 + $0x78] sm:$0xff]
    %v56 = vadd.f32 %v40, %v42
    %v57 = vrot.slane %v56, 4
    %v58 = vadd.f32 %v56, %v57
    %v59 = vrot.slane %v58, 2
    %v60 = vadd.f32 %v58, %v59
    %v61 = vrot.slane %v60, 1
    %v62 = vadd.f32 %v60, %v61
    %v63 = vadd.f32 %v41, %v43
    %v64 = vrot.slane %v63, 4
    %v65 = vadd.f32 %v63, %v64
    %v66 = vrot.slane %v65, 2
    %v67 = vadd.f32 %v65, %v66
    %v68 = vrot.slane %v67, 1
    %v69 = vadd.f32 %v67, %v68
    %v70 = vadd.f32 %v44, %v46
    %v71 = vrot.slane %v70, 4
    %v72 = vadd.f32 %v70, %v71
    %v73 = vrot.slane %v72, 2
    %v74 = vadd.f32 %v72, %v73
    %v75 = vrot.slane %v74, 1
    %v76 = vadd.f32 %v74, %v75
    %v77 = vadd.f32 %v45, %v47
    %v78 = vrot.slane %v77, 4
    %v79 = vadd.f32 %v77, %v78
    %v80 = vrot.slane %v79, 2
    %v81 = vadd.f32 %v79, %v80
    %v82 = vrot.slane %v81, 1
    %v83 = vadd.f32 %v81, %v82
    %v84 = vadd.f32 %v48, %v50
    %v85 = vrot.slane %v84, 4
    %v86 = vadd.f32 %v84, %v85
    %v87 = vrot.slane %v86, 2
    %v88 = vadd.f32 %v86, %v87
    %v89 = vrot.slane %v88, 1
    %v90 = vadd.f32 %v88, %v89
    %v91 = vadd.f32 %v49, %v51
    %v92 = vrot.slane %v91, 4
    %v93 = vadd.f32 %v91, %v92
    %v94 = vrot.slane %v93, 2
    %v95 = vadd.f32 %v93, %v94
    %v96 = vrot.slane %v95, 1
    %v97 = vadd.f32 %v95, %v96
    %v98 = vadd.f32 %v52, %v54
    %v99 = vrot.slane %v98, 4
    %v100 = vadd.f32 %v98, %v99
    %v101 = vrot.slane %v100, 2
    %v102 = vadd.f32 %v100, %v101
    %v103 = vrot.slane %v102, 1
    %v104 = vadd.f32 %v102, %v103
    %v105 = vadd.f32 %v53, %v55
    %v106 = vrot.slane %v105, 4
    %v107 = vadd.f32 %v105, %v106
    %v108 = vrot.slane %v107, 2
    %v109 = vadd.f32 %v107, %v108
    %v110 = vrot.slane %v109, 1
    %v111 = vadd.f32 %v109, %v110
    %v112 = vrcp.pop 16.0
    %v113 = vmul.f32 %v62, %v112
    %v114 = vmul.f32 %v69, %v112
    %v115 = vmul.f32 %v76, %v112
    %v116 = vmul.f32 %v83, %v112
    %v117 = vmul.f32 %v90, %v112
    %v118 = vmul.f32 %v97, %v112
    %v119 = vmul.f32 %v104, %v112
    %v120 = vmul.f32 %v111, %v112
    %v121 = vsub.f32 %v40, %v113
    %v122 = vsub.f32 %v41, %v114
    %v123 = vsub.f32 %v42, %v113
    %v124 = vsub.f32 %v43, %v114
    %v125 = vsub.f32 %v44, %v115
    %v126 = vsub.f32 %v45, %v116
    %v127 = vsub.f32 %v46, %v115
    %v128 = vsub.f32 %v47, %v116
    %v129 = vsub.f32 %v48, %v117
    %v130 = vsub.f32 %v49, %v118
    %v131 = vsub.f32 %v50, %v117
    %v132 = vsub.f32 %v51, %v118
    %v133 = vsub.f32 %v52, %v119
    %v134 = vsub.f32 %v53, %v120
    %v135 = vsub.f32 %v54, %v119
    %v136 = vsub.f32 %v55, %v120
    %v137 = vmul.f32 %v121, %v121
    %v138 = vmul.f32 %v122, %v122
    %v139 = vmul.f32 %v123, %v123
    %v140 = vmul.f32 %v124, %v124
    %v141 = vmul.f32 %v125, %v125
    %v142 = vmul.f32 %v126, %v126
    %v143 = vmul.f32 %v127, %v127
    %v144 = vmul.f32 %v128, %v128
    %v145 = vmul.f32 %v129, %v129
    %v146 = vmul.f32 %v130, %v130
    %v147 = vmul.f32 %v131, %v131
    %v148 = vmul.f32 %v132, %v132
    %v149 = vmul.f32 %v133, %v133
    %v150 = vmul.f32 %v134, %v134
    %v151 = vmul.f32 %v135, %v135
    %v152 = vmul.f32 %v136, %v136
    %v153 = vadd.f32 %v137, %v139
    %v154 = vadd.f32 %v153, %v141
    %v155 = vadd.f32 %v154, %v143
    %v156 = vadd.f32 %v155, %v145
    %v157 = vadd.f32 %v156, %v147
    %v158 = vadd.f32 %v157, %v149
    %v159 = vadd.f32 %v158, %v151
    %v160 = vadd.f32 %v138, %v140
    %v161 = vadd.f32 %v160, %v142
    %v162 = vadd.f32 %v161, %v144
    %v163 = vadd.f32 %v162, %v146
    %v164 = vadd.f32 %v163, %v148
    %v165 = vadd.f32 %v164, %v150
    %v166 = vadd.f32 %v165, %v152
    %v167 = vld [vmem:[#allocation5] sm:$0xff]
    %v168 = vld [vmem:[#allocation5 + $0x8] sm:$0xff]
    %v169 = vld [vmem:[#allocation5 + $0x10] sm:$0xff]
    %v170 = vld [vmem:[#allocation5 + $0x18] sm:$0xff]
    %v171 = vld [vmem:[#allocation5 + $0x20] sm:$0xff]
    %v172 = vld [vmem:[#allocation5 + $0x28] sm:$0xff]
    %v173 = vld [vmem:[#allocation5 + $0x30] sm:$0xff]
    %v174 = vld [vmem:[#allocation5 + $0x38] sm:$0xff]
    %v175 = vld [vmem:[#allocation5 + $0x40] sm:$0xff]
    %v176 = vld [vmem:[#allocation5 + $0x48] sm:$0xff]
    %v177 = vld [vmem:[#allocation5 + $0x50] sm:$0xff]
    %v178 = vld [vmem:[#allocation5 + $0x58] sm:$0xff]
    %v179 = vld [vmem:[#allocation5 + $0x60] sm:$0xff]
    %v180 = vld [vmem:[#allocation5 + $0x68] sm:$0xff]
    %v181 = vld [vmem:[#allocation5 + $0x70] sm:$0xff]
    %v182 = vld [vmem:[#allocation5 + $0x78] sm:$0xff]
    %v183 = vadd.f32 %v167, %v169
    %v184 = vrot.slane %v183, 4
    %v185 = vadd.f32 %v183, %v184
    %v186 = vrot.slane %v185, 2
    %v187 = vadd.f32 %v185, %v186
    %v188 = vrot.slane %v187, 1
    %v189 = vadd.f32 %v187, %v188
    %v190 = vadd.f32 %v168, %v170
    %v191 = vrot.slane %v190, 4
    %v192 = vadd.f32 %v190, %v191
    %v193 = vrot.slane %v192, 2
    %v194 = vadd.f32 %v192, %v193
    %v195 = vrot.slane %v194, 1
    %v196 = vadd.f32 %v194, %v195
    %v197 = vadd.f32 %v171, %v173
    %v198 = vrot.slane %v197, 4
    %v199 = vadd.f32 %v197, %v198
    %v200 = vrot.slane %v199, 2
    %v201 = vadd.f32 %v199, %v200
    %v202 = vrot.slane %v201, 1
    %v203 = vadd.f32 %v201, %v202
    %v204 = vadd.f32 %v172, %v174
    %v205 = vrot.slane %v204, 4
    %v206 = vadd.f32 %v204, %v205
    %v207 = vrot.slane %v206, 2
    %v208 = vadd.f32 %v206, %v207
    %v209 = vrot.slane %v208, 1
    %v210 = vadd.f32 %v208, %v209
    %v211 = vadd.f32 %v175, %v177
    %v212 = vrot.slane %v211, 4
    %v213 = vadd.f32 %v211, %v212
    %v214 = vrot.slane %v213, 2
    %v215 = vadd.f32 %v213, %v214
    %v216 = vrot.slane %v215, 1
    %v217 = vadd.f32 %v215, %v216
    %v218 = vadd.f32 %v176, %v178
    %v219 = vrot.slane %v218, 4
    %v220 = vadd.f32 %v218, %v219
    %v221 = vrot.slane %v220, 2
    %v222 = vadd.f32 %v220, %v221
    %v223 = vrot.slane %v222, 1
    %v224 = vadd.f32 %v222, %v223
    %v225 = vadd.f32 %v179, %v181
    %v226 = vrot.slane %v225, 4
    %v227 = vadd.f32 %v225, %v226
    %v228 = vrot.slane %v227, 2
    %v229 = vadd.f32 %v227, %v228
    %v230 = vrot.slane %v229, 1
    %v231 = vadd.f32 %v229, %v230
    %v232 = vadd.f32 %v180, %v182
    %v233 = vrot.slane %v232, 4
    %v234 = vadd.f32 %v232, %v233
    %v235 = vrot.slane %v234, 2
    %v236 = vadd.f32 %v234, %v235
    %v237 = vrot.slane %v236, 1
    %v238 = vadd.f32 %v236, %v237
    %v239 = vmul.f32 %v189, %v112
    %v240 = vmul.f32 %v196, %v112
    %v241 = vmul.f32 %v203, %v112
    %v242 = vmul.f32 %v210, %v112
    %v243 = vmul.f32 %v217, %v112
    %v244 = vmul.f32 %v224, %v112
    %v245 = vmul.f32 %v231, %v112
    %v246 = vmul.f32 %v238, %v112
    %v247 = vsub.f32 %v167, %v239
    %v248 = vsub.f32 %v168, %v240
    %v249 = vsub.f32 %v169, %v239
    %v250 = vsub.f32 %v170, %v240
    %v251 = vsub.f32 %v171, %v241
    %v252 = vsub.f32 %v172, %v242
    %v253 = vsub.f32 %v173, %v241
    %v254 = vsub.f32 %v174, %v242
    %v255 = vsub.f32 %v175, %v243
    %v256 = vsub.f32 %v176, %v244
    %v257 = vsub.f32 %v177, %v243
    %v258 = vsub.f32 %v178, %v244
    %v259 = vsub.f32 %v179, %v245
    %v260 = vsub.f32 %v180, %v246
    %v261 = vsub.f32 %v181, %v245
    %v262 = vsub.f32 %v182, %v246
    %v263 = vmul.f32 %v247, %v247
    %v264 = vmul.f32 %v248, %v248
    %v265 = vmul.f32 %v249, %v249
    %v266 = vmul.f32 %v250, %v250
    %v267 = vmul.f32 %v251, %v251
    %v268 = vmul.f32 %v252, %v252
    %v269 = vmul.f32 %v253, %v253
    %v270 = vmul.f32 %v254, %v254
    %v271 = vmul.f32 %v255, %v255
    %v272 = vmul.f32 %v256, %v256
    %v273 = vmul.f32 %v257, %v257
    %v274 = vmul.f32 %v258, %v258
    %v275 = vmul.f32 %v259, %v259
    %v276 = vmul.f32 %v260, %v260
    %v277 = vmul.f32 %v261, %v261
    %v278 = vmul.f32 %v262, %v262
    %v279 = vadd.f32 %v263, %v265
    %v280 = vadd.f32 %v279, %v267
    %v281 = vadd.f32 %v280, %v269
    %v282 = vadd.f32 %v281, %v271
    %v283 = vadd.f32 %v282, %v273
    %v284 = vadd.f32 %v283, %v275
    %v285 = vadd.f32 %v284, %v277
    %v286 = vadd.f32 %v264, %v266
    %v287 = vadd.f32 %v286, %v268
    %v288 = vadd.f32 %v287, %v270
    %v289 = vadd.f32 %v288, %v272
    %v290 = vadd.f32 %v289, %v274
    %v291 = vadd.f32 %v290, %v276
    %v292 = vadd.f32 %v291, %v278
    %v293 = vadd.f32 %v159, %v285
    %v294 = vadd.f32 %v166, %v292
    %295 = vst [vmem:[#allocation7] sm:$0xff] %v293
    %296 = vst [vmem:[#allocation7 + $0x8] sm:$0xff] %v294
    // Predicated region
    $region18: #{tpu_custom_call.1} parent=1 // pred_check
      _
    $region19: #{tpu_custom_call.1} parent=1 // pred_check_branch
      %298 = sbr.rel (0) target = $region21
    $region20: #{tpu_custom_call.1} parent=1 // pred_region
      %s300 = ssub.s32 256, 256
      %301 = vsyncadd [#allocation4], %s300
      %s303 = sshll.u32 [#allocation7], 4
      %s304 = int_to_ptr.vmem [resolvable:$true] %s303
      %306 = dma.vmem_to_hbm [thread:$0]  %s304, 256, %s2, [#allocation4]
    $region21: #{tpu_custom_call.1} parent=1 // pred_fallthru
      _
    // Predicated region
    $region22: #{tpu_custom_call.1} parent=1 // pred_check
      _
    $region23: #{tpu_custom_call.1} parent=1 // pred_check_branch
      %308 = sbr.rel (0) target = $region25
    $region24: #{tpu_custom_call.1} parent=1 // pred_region
      %309 = dma.done [#allocation4], 256
    $region25: #{tpu_custom_call.1} parent=1 // pred_fallthru
      _
    %310 = vsyncpa [#allocation3], 1
    %311 = vsyncpa [#allocation6], 1
    %312 = vsyncpa [#allocation4], 1

</llo_original>
